<compile_context>
chip_gen: v5e
topology: v5e:2x2
jax: 0.10.0
libtpu: 0.0.40
codegen_flags: <defaults>
</compile_context>

<pallas_src>
import functools

import jax
import jax.numpy as jnp
from jax.experimental import pallas as pl
from jax.experimental.pallas import tpu as pltpu

VMEM_SPEC = pl.BlockSpec(memory_space=pltpu.MemorySpace.VMEM)
CLASS_PAD = 128   # lane-dense final output
GRAPH_PAD = 8     # sublane-dense final output (>= one full sublane group)
NEG_INF = -1e30   # padded-class bias (exp -> 0, never the row max)


# ----------------------------- fused Pallas kernel ------------------------------ #
def _fused_gin_jk_kernel(num_layers, hidden, eps, adj_ref, x_ref, *refs):
    """refs layout (inputs):
         per layer l: w1, b1, w2_folded, b2_folded, bn_shift           (5 * num_layers)
         pool (zero-padded to GRAPH_PAD rows)                          (1)
         lin1_w block per layer                                        (num_layers)
         lin1_b, lin2_w_padded, lin2_b_padded                          (3)
       then the single output ref.
    """
    layer_refs = refs[:5 * num_layers]
    idx = 5 * num_layers
    pool_ref = refs[idx]
    lin1_w_refs = refs[idx + 1: idx + 1 + num_layers]
    lin1_b_ref, lin2_w_ref, lin2_b_ref, out_ref = refs[idx + 1 + num_layers:]

    adj = adj_ref[...]            # loaded into VMEM once, reused by every layer
    pool = pool_ref[...]
    h = x_ref[...]
    z = lin1_b_ref[...]           # (1, hidden) -> broadcasts over graph rows

    for l in range(num_layers):
        w1, b1, w2, b2, shift = layer_refs[5 * l: 5 * l + 5]
        # GINConv aggregation: (1 + eps_l) * x_i + sum_{j -> i} x_j
        agg = jnp.dot(adj, h, preferred_element_type=jnp.float32) + (1.0 + eps[l]) * h
        # MLP: Linear -> ReLU -> Linear(BN scale folded) -> ReLU -> (+ BN shift)
        t = jnp.maximum(
            jnp.dot(agg, w1[...], preferred_element_type=jnp.float32) + b1[...], 0.0)
        t = jnp.maximum(
            jnp.dot(t, w2[...], preferred_element_type=jnp.float32) + b2[...], 0.0)
        h = t + shift[...]
        # JK 'cat' + lin1 decomposition: pool this layer's output (cheap: G << N),
        # then accumulate its contribution through the matching row-block of lin1.
        pooled_l = jnp.dot(pool, h, preferred_element_type=jnp.float32)
        z = z + jnp.dot(pooled_l, lin1_w_refs[l][...], preferred_element_type=jnp.float32)

    z = jnp.maximum(z, 0.0)
    # Dropout(p=0.5) in eval mode == identity
    logits = jnp.dot(z, lin2_w_ref[...], preferred_element_type=jnp.float32) + lin2_b_ref[...]
    # log_softmax (padded class lanes carry a -1e30 bias -> exp == 0, never the max)
    m = jnp.max(logits, axis=-1, keepdims=True)
    s = logits - m
    lse = jnp.log(jnp.sum(jnp.exp(s), axis=-1, keepdims=True))
    out_ref[...] = s - lse


# ----------------------------- model wrapper ------------------------------- #
def gin_with_jk_forward(params, x, adj, pool_mat):
    num_layers = len(params["convs"])
    n, num_features = x.shape
    hidden = params["convs"][0]["w1"].shape[1]
    num_graphs = pool_mat.shape[0]
    num_classes = params["lin2_w"].shape[1]

    eps = tuple(float(layer["eps"]) for layer in params["convs"])

    # Sublane-pad the pooling matrix (zero rows -> zero pooled features for pad graphs).
    graph_pad = max(GRAPH_PAD, num_graphs)
    pool_pad = jnp.zeros((graph_pad, n), jnp.float32).at[:num_graphs, :].set(pool_mat)

    inputs = [adj, x]
    for layer in params["convs"]:
        scale = layer["bn_scale"]          # = gamma / sqrt(var + eps_bn) > 0 (required for the fold)
        w2_folded = layer["w2"] * scale[None, :]
        b2_folded = layer["b2"] * scale
        inputs += [layer["w1"], layer["b1"].reshape(1, -1),
                   w2_folded, b2_folded.reshape(1, -1),
                   layer["bn_shift"].reshape(1, -1)]
    inputs.append(pool_pad)
    for l in range(num_layers):            # lin1 split into per-layer row blocks (JK decomposition)
        inputs.append(params["lin1_w"][l * hidden:(l + 1) * hidden, :])
    inputs.append(params["lin1_b"].reshape(1, -1))
    lin2_w_pad = jnp.zeros((hidden, CLASS_PAD), jnp.float32).at[:, :num_classes].set(params["lin2_w"])
    lin2_b_pad = jnp.full((1, CLASS_PAD), NEG_INF, jnp.float32).at[0, :num_classes].set(params["lin2_b"])
    inputs += [lin2_w_pad, lin2_b_pad]

    # advisory cost estimate for XLA scheduling around the fused call
    flops = 0
    d_in = num_features
    for _ in range(num_layers):
        flops += 2 * n * n * d_in                       # A @ h
        flops += 2 * n * d_in * hidden                  # lin_a of the GIN MLP
        flops += 2 * n * hidden * hidden                # lin_b of the GIN MLP
        flops += 2 * graph_pad * n * hidden             # pooling of this layer
        flops += 2 * graph_pad * hidden * hidden        # lin1 block
        d_in = hidden
    flops += 2 * graph_pad * hidden * CLASS_PAD         # lin2
    bytes_accessed = 4 * (int(sum(int(a.size) for a in inputs)) + graph_pad * CLASS_PAD)
    cost = pl.CostEstimate(flops=flops,
                           transcendentals=graph_pad * (CLASS_PAD + 1),
                           bytes_accessed=bytes_accessed)

    out_pad = pl.pallas_call(
        functools.partial(_fused_gin_jk_kernel, num_layers, hidden, eps),
        out_shape=jax.ShapeDtypeStruct((graph_pad, CLASS_PAD), jnp.float32),
        in_specs=[VMEM_SPEC] * len(inputs),
        out_specs=VMEM_SPEC,
        cost_estimate=cost,
    )(*inputs)
    return out_pad[:num_graphs, :num_classes]


# ----------------------------- pure-JAX reference --------------------------- #
def reference_forward(params, x, adj, pool_mat):
    xs = []
    h = x
    for layer in params["convs"]:
        agg = adj @ h + (1.0 + layer["eps"]) * h
        t = jnp.maximum(agg @ layer["w1"] + layer["b1"], 0.0)
        t = jnp.maximum(t @ layer["w2"] + layer["b2"], 0.0)
        h = t * layer["bn_scale"] + layer["bn_shift"]       # BN un-folded (validates the fold)
        xs.append(h)
    x_cat = jnp.concatenate(xs, axis=-1)                    # JumpingKnowledge(mode='cat')
    pooled = pool_mat @ x_cat                                # global_mean_pool
    hh = jnp.maximum(pooled @ params["lin1_w"] + params["lin1_b"], 0.0)
    logits = hh @ params["lin2_w"] + params["lin2_b"]
    return jax.nn.log_softmax(logits, axis=-1)


# -------------------------------- main ------------------------------------- #
if __name__ == "__main__":
    NUM_NODES = 32
    NUM_FEATURES = 16
    HIDDEN = 32
    NUM_LAYERS = 3
    NUM_CLASSES = 4
    NUM_GRAPHS = 2
    EDGES_PER_GRAPH = 32
    BN_EPS = 1e-5

    key = jax.random.PRNGKey(0)

    # ---- synthetic graph batch (2 graphs of 16 nodes each) ----
    key, kx = jax.random.split(key)
    x = jax.random.normal(kx, (NUM_NODES, NUM_FEATURES), dtype=jnp.float32)

    batch = jnp.concatenate([jnp.zeros(16, jnp.int32), jnp.ones(16, jnp.int32)])

    edge_list = []
    for g in range(NUM_GRAPHS):
        key, ks, kd = jax.random.split(key, 3)
        src = jax.random.randint(ks, (EDGES_PER_GRAPH,), 0, 16) + 16 * g
        dst = jax.random.randint(kd, (EDGES_PER_GRAPH,), 0, 16) + 16 * g
        edge_list.append(jnp.stack([src, dst]))
    edge_index = jnp.concatenate(edge_list, axis=1)  # [2, E]

    # dense adjacency for GINConv: A[dst, src] counts edges src -> dst
    adj = jnp.zeros((NUM_NODES, NUM_NODES), jnp.float32)
    adj = adj.at[edge_index[1], edge_index[0]].add(1.0)

    # global_mean_pool matrix  P[g, i] = 1/count_g if batch[i]==g
    one_hot = (batch[None, :] == jnp.arange(NUM_GRAPHS)[:, None]).astype(jnp.float32)
    counts = one_hot.sum(axis=1, keepdims=True)
    pool_mat = one_hot / counts

    # ---- deterministic parameters (weights stored as [in, out]) ----
    def linear(k, fan_in, fan_out):
        kw, kb = jax.random.split(k)
        w = jax.random.normal(kw, (fan_in, fan_out), jnp.float32) * (1.0 / jnp.sqrt(fan_in))
        b = jax.random.normal(kb, (fan_out,), jnp.float32) * 0.01
        return w, b

    convs = []
    in_dim = NUM_FEATURES
    for _ in range(NUM_LAYERS):
        key, k1, k2 = jax.random.split(key, 3)
        w1, b1 = linear(k1, in_dim, HIDDEN)
        w2, b2 = linear(k2, HIDDEN, HIDDEN)
        # BatchNorm1d after __init__ / eval mode: gamma=1, beta=0, mean=0, var=1
        gamma = jnp.ones((HIDDEN,), jnp.float32)
        beta = jnp.zeros((HIDDEN,), jnp.float32)
        running_mean = jnp.zeros((HIDDEN,), jnp.float32)
        running_var = jnp.ones((HIDDEN,), jnp.float32)
        bn_scale = gamma / jnp.sqrt(running_var + BN_EPS)
        bn_shift = beta - running_mean * bn_scale
        convs.append(dict(w1=w1, b1=b1, w2=w2, b2=b2,
                          bn_scale=bn_scale, bn_shift=bn_shift,
                          eps=0.0))  # train_eps=True -> learnable eps, initialized to 0
        in_dim = HIDDEN

    key, kl1, kl2 = jax.random.split(key, 3)
    lin1_w, lin1_b = linear(kl1, NUM_LAYERS * HIDDEN, HIDDEN)   # JK 'cat' -> hidden
    lin2_w, lin2_b = linear(kl2, HIDDEN, NUM_CLASSES)

    params = dict(convs=convs, lin1_w=lin1_w, lin1_b=lin1_b,
                  lin2_w=lin2_w, lin2_b=lin2_b)

    out = gin_with_jk_forward(params, x, adj, pool_mat)
    out = jax.block_until_ready(out)

    ref = reference_forward(params, x, adj, pool_mat)
    assert out.shape == (NUM_GRAPHS, NUM_CLASSES)
    assert jnp.allclose(out, ref, atol=1e-4, rtol=1e-4)

    print("KERNEL_OK")
</pallas_src>

<mosaic_0001>
module attributes {stable_mosaic.version = 11 : i64} {
  func.func @_fused_gin_jk_kernel(%arg0: memref<32x32xf32, #tpu.memory_space<vmem>>, %arg1: memref<32x16xf32, #tpu.memory_space<vmem>>, %arg2: memref<16x32xf32, #tpu.memory_space<vmem>>, %arg3: memref<1x32xf32, #tpu.memory_space<vmem>>, %arg4: memref<32x32xf32, #tpu.memory_space<vmem>>, %arg5: memref<1x32xf32, #tpu.memory_space<vmem>>, %arg6: memref<1x32xf32, #tpu.memory_space<vmem>>, %arg7: memref<32x32xf32, #tpu.memory_space<vmem>>, %arg8: memref<1x32xf32, #tpu.memory_space<vmem>>, %arg9: memref<32x32xf32, #tpu.memory_space<vmem>>, %arg10: memref<1x32xf32, #tpu.memory_space<vmem>>, %arg11: memref<1x32xf32, #tpu.memory_space<vmem>>, %arg12: memref<32x32xf32, #tpu.memory_space<vmem>>, %arg13: memref<1x32xf32, #tpu.memory_space<vmem>>, %arg14: memref<32x32xf32, #tpu.memory_space<vmem>>, %arg15: memref<1x32xf32, #tpu.memory_space<vmem>>, %arg16: memref<1x32xf32, #tpu.memory_space<vmem>>, %arg17: memref<8x32xf32, #tpu.memory_space<vmem>>, %arg18: memref<32x32xf32, #tpu.memory_space<vmem>>, %arg19: memref<32x32xf32, #tpu.memory_space<vmem>>, %arg20: memref<32x32xf32, #tpu.memory_space<vmem>>, %arg21: memref<1x32xf32, #tpu.memory_space<vmem>>, %arg22: memref<32x128xf32, #tpu.memory_space<vmem>>, %arg23: memref<1x128xf32, #tpu.memory_space<vmem>>, %arg24: memref<8x128xf32, #tpu.memory_space<vmem>>) attributes {dimension_semantics = [], scalar_prefetch = 0 : i64, scratch_operands = 0 : i64, tpu.core_type = #tpu.core_type<tc>} {
    %c0 = arith.constant 0 : index
    %c0_0 = arith.constant 0 : index
    %0 = vector.load %arg0[%c0, %c0_0] : memref<32x32xf32, #tpu.memory_space<vmem>>, vector<32x32xf32>
    %c0_1 = arith.constant 0 : index
    %c0_2 = arith.constant 0 : index
    %1 = vector.load %arg17[%c0_1, %c0_2] : memref<8x32xf32, #tpu.memory_space<vmem>>, vector<8x32xf32>
    %c0_3 = arith.constant 0 : index
    %c0_4 = arith.constant 0 : index
    %2 = vector.load %arg1[%c0_3, %c0_4] : memref<32x16xf32, #tpu.memory_space<vmem>>, vector<32x16xf32>
    %c0_5 = arith.constant 0 : index
    %c0_6 = arith.constant 0 : index
    %3 = vector.load %arg21[%c0_5, %c0_6] : memref<1x32xf32, #tpu.memory_space<vmem>>, vector<1x32xf32>
    %cst = arith.constant dense<0.000000e+00> : vector<32x16xf32>
    %4 = tpu.matmul %0, %2, %cst {dimension_numbers = #tpu.dot_dimension_numbers<[1], [0], [0], [1], [0, 0, 1, 1], [], []>} : vector<32x32xf32>, vector<32x16xf32>, vector<32x16xf32> -> vector<32x16xf32>
    %cst_7 = arith.constant 1.000000e+00 : f32
    %5 = vector.broadcast %cst_7 : f32 to vector<32x16xf32>
    %6 = arith.mulf %5, %2 : vector<32x16xf32>
    %7 = arith.addf %4, %6 : vector<32x16xf32>
    %c0_8 = arith.constant 0 : index
    %c0_9 = arith.constant 0 : index
    %8 = vector.load %arg2[%c0_8, %c0_9] : memref<16x32xf32, #tpu.memory_space<vmem>>, vector<16x32xf32>
    %cst_10 = arith.constant dense<0.000000e+00> : vector<32x32xf32>
    %9 = tpu.matmul %7, %8, %cst_10 {dimension_numbers = #tpu.dot_dimension_numbers<[1], [0], [0], [1], [0, 0, 1, 1], [], []>} : vector<32x16xf32>, vector<16x32xf32>, vector<32x32xf32> -> vector<32x32xf32>
    %c0_11 = arith.constant 0 : index
    %c0_12 = arith.constant 0 : index
    %10 = vector.load %arg3[%c0_11, %c0_12] : memref<1x32xf32, #tpu.memory_space<vmem>>, vector<1x32xf32>
    %11 = vector.broadcast %10 : vector<1x32xf32> to vector<32x32xf32>
    %12 = arith.addf %9, %11 : vector<32x32xf32>
    %cst_13 = arith.constant 0.000000e+00 : f32
    %13 = vector.broadcast %cst_13 : f32 to vector<32x32xf32>
    %14 = arith.maximumf %12, %13 : vector<32x32xf32>
    %c0_14 = arith.constant 0 : index
    %c0_15 = arith.constant 0 : index
    %15 = vector.load %arg4[%c0_14, %c0_15] : memref<32x32xf32, #tpu.memory_space<vmem>>, vector<32x32xf32>
    %cst_16 = arith.constant dense<0.000000e+00> : vector<32x32xf32>
    %16 = tpu.matmul %14, %15, %cst_16 {dimension_numbers = #tpu.dot_dimension_numbers<[1], [0], [0], [1], [0, 0, 1, 1], [], []>} : vector<32x32xf32>, vector<32x32xf32>, vector<32x32xf32> -> vector<32x32xf32>
    %c0_17 = arith.constant 0 : index
    %c0_18 = arith.constant 0 : index
    %17 = vector.load %arg5[%c0_17, %c0_18] : memref<1x32xf32, #tpu.memory_space<vmem>>, vector<1x32xf32>
    %18 = vector.broadcast %17 : vector<1x32xf32> to vector<32x32xf32>
    %19 = arith.addf %16, %18 : vector<32x32xf32>
    %cst_19 = arith.constant 0.000000e+00 : f32
    %20 = vector.broadcast %cst_19 : f32 to vector<32x32xf32>
    %21 = arith.maximumf %19, %20 : vector<32x32xf32>
    %c0_20 = arith.constant 0 : index
    %c0_21 = arith.constant 0 : index
    %22 = vector.load %arg6[%c0_20, %c0_21] : memref<1x32xf32, #tpu.memory_space<vmem>>, vector<1x32xf32>
    %23 = vector.broadcast %22 : vector<1x32xf32> to vector<32x32xf32>
    %24 = arith.addf %21, %23 : vector<32x32xf32>
    %cst_22 = arith.constant dense<0.000000e+00> : vector<8x32xf32>
    %25 = tpu.matmul %1, %24, %cst_22 {dimension_numbers = #tpu.dot_dimension_numbers<[1], [0], [0], [1], [0, 0, 1, 1], [], []>} : vector<8x32xf32>, vector<32x32xf32>, vector<8x32xf32> -> vector<8x32xf32>
    %c0_23 = arith.constant 0 : index
    %c0_24 = arith.constant 0 : index
    %26 = vector.load %arg18[%c0_23, %c0_24] : memref<32x32xf32, #tpu.memory_space<vmem>>, vector<32x32xf32>
    %cst_25 = arith.constant dense<0.000000e+00> : vector<8x32xf32>
    %27 = tpu.matmul %25, %26, %cst_25 {dimension_numbers = #tpu.dot_dimension_numbers<[1], [0], [0], [1], [0, 0, 1, 1], [], []>} : vector<8x32xf32>, vector<32x32xf32>, vector<8x32xf32> -> vector<8x32xf32>
    %28 = vector.broadcast %3 : vector<1x32xf32> to vector<8x32xf32>
    %29 = arith.addf %28, %27 : vector<8x32xf32>
    %cst_26 = arith.constant dense<0.000000e+00> : vector<32x32xf32>
    %30 = tpu.matmul %0, %24, %cst_26 {dimension_numbers = #tpu.dot_dimension_numbers<[1], [0], [0], [1], [0, 0, 1, 1], [], []>} : vector<32x32xf32>, vector<32x32xf32>, vector<32x32xf32> -> vector<32x32xf32>
    %cst_27 = arith.constant 1.000000e+00 : f32
    %31 = vector.broadcast %cst_27 : f32 to vector<32x32xf32>
    %32 = arith.mulf %31, %24 : vector<32x32xf32>
    %33 = arith.addf %30, %32 : vector<32x32xf32>
    %c0_28 = arith.constant 0 : index
    %c0_29 = arith.constant 0 : index
    %34 = vector.load %arg7[%c0_28, %c0_29] : memref<32x32xf32, #tpu.memory_space<vmem>>, vector<32x32xf32>
    %cst_30 = arith.constant dense<0.000000e+00> : vector<32x32xf32>
    %35 = tpu.matmul %33, %34, %cst_30 {dimension_numbers = #tpu.dot_dimension_numbers<[1], [0], [0], [1], [0, 0, 1, 1], [], []>} : vector<32x32xf32>, vector<32x32xf32>, vector<32x32xf32> -> vector<32x32xf32>
    %c0_31 = arith.constant 0 : index
    %c0_32 = arith.constant 0 : index
    %36 = vector.load %arg8[%c0_31, %c0_32] : memref<1x32xf32, #tpu.memory_space<vmem>>, vector<1x32xf32>
    %37 = vector.broadcast %36 : vector<1x32xf32> to vector<32x32xf32>
    %38 = arith.addf %35, %37 : vector<32x32xf32>
    %cst_33 = arith.constant 0.000000e+00 : f32
    %39 = vector.broadcast %cst_33 : f32 to vector<32x32xf32>
    %40 = arith.maximumf %38, %39 : vector<32x32xf32>
    %c0_34 = arith.constant 0 : index
    %c0_35 = arith.constant 0 : index
    %41 = vector.load %arg9[%c0_34, %c0_35] : memref<32x32xf32, #tpu.memory_space<vmem>>, vector<32x32xf32>
    %cst_36 = arith.constant dense<0.000000e+00> : vector<32x32xf32>
    %42 = tpu.matmul %40, %41, %cst_36 {dimension_numbers = #tpu.dot_dimension_numbers<[1], [0], [0], [1], [0, 0, 1, 1], [], []>} : vector<32x32xf32>, vector<32x32xf32>, vector<32x32xf32> -> vector<32x32xf32>
    %c0_37 = arith.constant 0 : index
    %c0_38 = arith.constant 0 : index
    %43 = vector.load %arg10[%c0_37, %c0_38] : memref<1x32xf32, #tpu.memory_space<vmem>>, vector<1x32xf32>
    %44 = vector.broadcast %43 : vector<1x32xf32> to vector<32x32xf32>
    %45 = arith.addf %42, %44 : vector<32x32xf32>
    %cst_39 = arith.constant 0.000000e+00 : f32
    %46 = vector.broadcast %cst_39 : f32 to vector<32x32xf32>
    %47 = arith.maximumf %45, %46 : vector<32x32xf32>
    %c0_40 = arith.constant 0 : index
    %c0_41 = arith.constant 0 : index
    %48 = vector.load %arg11[%c0_40, %c0_41] : memref<1x32xf32, #tpu.memory_space<vmem>>, vector<1x32xf32>
    %49 = vector.broadcast %48 : vector<1x32xf32> to vector<32x32xf32>
    %50 = arith.addf %47, %49 : vector<32x32xf32>
    %cst_42 = arith.constant dense<0.000000e+00> : vector<8x32xf32>
    %51 = tpu.matmul %1, %50, %cst_42 {dimension_numbers = #tpu.dot_dimension_numbers<[1], [0], [0], [1], [0, 0, 1, 1], [], []>} : vector<8x32xf32>, vector<32x32xf32>, vector<8x32xf32> -> vector<8x32xf32>
    %c0_43 = arith.constant 0 : index
    %c0_44 = arith.constant 0 : index
    %52 = vector.load %arg19[%c0_43, %c0_44] : memref<32x32xf32, #tpu.memory_space<vmem>>, vector<32x32xf32>
    %cst_45 = arith.constant dense<0.000000e+00> : vector<8x32xf32>
    %53 = tpu.matmul %51, %52, %cst_45 {dimension_numbers = #tpu.dot_dimension_numbers<[1], [0], [0], [1], [0, 0, 1, 1], [], []>} : vector<8x32xf32>, vector<32x32xf32>, vector<8x32xf32> -> vector<8x32xf32>
    %54 = arith.addf %29, %53 : vector<8x32xf32>
    %cst_46 = arith.constant dense<0.000000e+00> : vector<32x32xf32>
    %55 = tpu.matmul %0, %50, %cst_46 {dimension_numbers = #tpu.dot_dimension_numbers<[1], [0], [0], [1], [0, 0, 1, 1], [], []>} : vector<32x32xf32>, vector<32x32xf32>, vector<32x32xf32> -> vector<32x32xf32>
    %cst_47 = arith.constant 1.000000e+00 : f32
    %56 = vector.broadcast %cst_47 : f32 to vector<32x32xf32>
    %57 = arith.mulf %56, %50 : vector<32x32xf32>
    %58 = arith.addf %55, %57 : vector<32x32xf32>
    %c0_48 = arith.constant 0 : index
    %c0_49 = arith.constant 0 : index
    %59 = vector.load %arg12[%c0_48, %c0_49] : memref<32x32xf32, #tpu.memory_space<vmem>>, vector<32x32xf32>
    %cst_50 = arith.constant dense<0.000000e+00> : vector<32x32xf32>
    %60 = tpu.matmul %58, %59, %cst_50 {dimension_numbers = #tpu.dot_dimension_numbers<[1], [0], [0], [1], [0, 0, 1, 1], [], []>} : vector<32x32xf32>, vector<32x32xf32>, vector<32x32xf32> -> vector<32x32xf32>
    %c0_51 = arith.constant 0 : index
    %c0_52 = arith.constant 0 : index
    %61 = vector.load %arg13[%c0_51, %c0_52] : memref<1x32xf32, #tpu.memory_space<vmem>>, vector<1x32xf32>
    %62 = vector.broadcast %61 : vector<1x32xf32> to vector<32x32xf32>
    %63 = arith.addf %60, %62 : vector<32x32xf32>
    %cst_53 = arith.constant 0.000000e+00 : f32
    %64 = vector.broadcast %cst_53 : f32 to vector<32x32xf32>
    %65 = arith.maximumf %63, %64 : vector<32x32xf32>
    %c0_54 = arith.constant 0 : index
    %c0_55 = arith.constant 0 : index
    %66 = vector.load %arg14[%c0_54, %c0_55] : memref<32x32xf32, #tpu.memory_space<vmem>>, vector<32x32xf32>
    %cst_56 = arith.constant dense<0.000000e+00> : vector<32x32xf32>
    %67 = tpu.matmul %65, %66, %cst_56 {dimension_numbers = #tpu.dot_dimension_numbers<[1], [0], [0], [1], [0, 0, 1, 1], [], []>} : vector<32x32xf32>, vector<32x32xf32>, vector<32x32xf32> -> vector<32x32xf32>
    %c0_57 = arith.constant 0 : index
    %c0_58 = arith.constant 0 : index
    %68 = vector.load %arg15[%c0_57, %c0_58] : memref<1x32xf32, #tpu.memory_space<vmem>>, vector<1x32xf32>
    %69 = vector.broadcast %68 : vector<1x32xf32> to vector<32x32xf32>
    %70 = arith.addf %67, %69 : vector<32x32xf32>
    %cst_59 = arith.constant 0.000000e+00 : f32
    %71 = vector.broadcast %cst_59 : f32 to vector<32x32xf32>
    %72 = arith.maximumf %70, %71 : vector<32x32xf32>
    %c0_60 = arith.constant 0 : index
    %c0_61 = arith.constant 0 : index
    %73 = vector.load %arg16[%c0_60, %c0_61] : memref<1x32xf32, #tpu.memory_space<vmem>>, vector<1x32xf32>
    %74 = vector.broadcast %73 : vector<1x32xf32> to vector<32x32xf32>
    %75 = arith.addf %72, %74 : vector<32x32xf32>
    %cst_62 = arith.constant dense<0.000000e+00> : vector<8x32xf32>
    %76 = tpu.matmul %1, %75, %cst_62 {dimension_numbers = #tpu.dot_dimension_numbers<[1], [0], [0], [1], [0, 0, 1, 1], [], []>} : vector<8x32xf32>, vector<32x32xf32>, vector<8x32xf32> -> vector<8x32xf32>
    %c0_63 = arith.constant 0 : index
    %c0_64 = arith.constant 0 : index
    %77 = vector.load %arg20[%c0_63, %c0_64] : memref<32x32xf32, #tpu.memory_space<vmem>>, vector<32x32xf32>
    %cst_65 = arith.constant dense<0.000000e+00> : vector<8x32xf32>
    %78 = tpu.matmul %76, %77, %cst_65 {dimension_numbers = #tpu.dot_dimension_numbers<[1], [0], [0], [1], [0, 0, 1, 1], [], []>} : vector<8x32xf32>, vector<32x32xf32>, vector<8x32xf32> -> vector<8x32xf32>
    %79 = arith.addf %54, %78 : vector<8x32xf32>
    %cst_66 = arith.constant 0.000000e+00 : f32
    %80 = vector.broadcast %cst_66 : f32 to vector<8x32xf32>
    %81 = arith.maximumf %79, %80 : vector<8x32xf32>
    %c0_67 = arith.constant 0 : index
    %c0_68 = arith.constant 0 : index
    %82 = vector.load %arg22[%c0_67, %c0_68] : memref<32x128xf32, #tpu.memory_space<vmem>>, vector<32x128xf32>
    %cst_69 = arith.constant dense<0.000000e+00> : vector<8x128xf32>
    %83 = tpu.matmul %81, %82, %cst_69 {dimension_numbers = #tpu.dot_dimension_numbers<[1], [0], [0], [1], [0, 0, 1, 1], [], []>} : vector<8x32xf32>, vector<32x128xf32>, vector<8x128xf32> -> vector<8x128xf32>
    %c0_70 = arith.constant 0 : index
    %c0_71 = arith.constant 0 : index
    %84 = vector.load %arg23[%c0_70, %c0_71] : memref<1x128xf32, #tpu.memory_space<vmem>>, vector<1x128xf32>
    %85 = vector.broadcast %84 : vector<1x128xf32> to vector<8x128xf32>
    %86 = arith.addf %83, %85 : vector<8x128xf32>
    %cst_72 = arith.constant dense<0xFF800000> : vector<8xf32>
    %87 = vector.multi_reduction <maximumf>, %86, %cst_72 [1] : vector<8x128xf32> to vector<8xf32>
    %88 = vector.shape_cast %87 : vector<8xf32> to vector<8x1xf32>
    %89 = vector.broadcast %88 : vector<8x1xf32> to vector<8x128xf32>
    %90 = arith.subf %86, %89 : vector<8x128xf32>
    %91 = math.exp %90 : vector<8x128xf32>
    %cst_73 = arith.constant dense<0.000000e+00> : vector<8xf32>
    %92 = vector.multi_reduction <add>, %91, %cst_73 [1] : vector<8x128xf32> to vector<8xf32>
    %93 = vector.shape_cast %92 : vector<8xf32> to vector<8x1xf32>
    %94 = math.log %93 : vector<8x1xf32>
    %95 = vector.broadcast %94 : vector<8x1xf32> to vector<8x128xf32>
    %96 = arith.subf %90, %95 : vector<8x128xf32>
    %c0_74 = arith.constant 0 : index
    %c0_75 = arith.constant 0 : index
    %97 = vector.load %arg24[%c0_74, %c0_75] : memref<8x128xf32, #tpu.memory_space<vmem>>, vector<8x128xf32>
    tpu.vector_store %arg24[%c0_74, %c0_75], %96 {strides = array<i32>} : memref<8x128xf32, #tpu.memory_space<vmem>>, vector<8x128xf32>,
    return
  }
}

</mosaic_0001>

<llo_original>
// kernel: tpu_custom_call.1
$region0: #{tpu_custom_call.1}
  #allocation0 [shape = 'u32[]', space=smem, size = 0x4, offset = 0x4, fixed_abs, tag = 'smem constant byte address 0x4 - core index']
  #allocation1 [shape = 'u32[72,128]{1,0:T(1,128)}', space=vmem, size = 0x9000, scoped, tag = 'internal scratch']
  %s0 = inlined_call_operand.vmem [shape: f32[32,32], index: 0, kind: input, shape index: {}]
  %s1 = inlined_call_operand.vmem [shape: f32[32,16], index: 1, kind: input, shape index: {}]
  %s2 = inlined_call_operand.hbm [shape: f32[16,32], index: 2, kind: input, shape index: {}]
  %s3 = inlined_call_operand.hbm [shape: f32[1,32], index: 3, kind: input, shape index: {}]
  %s4 = inlined_call_operand.hbm [shape: f32[32,32], index: 4, kind: input, shape index: {}]
  %s5 = inlined_call_operand.hbm [shape: f32[1,32], index: 5, kind: input, shape index: {}]
  %s6 = inlined_call_operand.hbm [shape: f32[1,32], index: 6, kind: input, shape index: {}]
  %s7 = inlined_call_operand.hbm [shape: f32[32,32], index: 7, kind: input, shape index: {}]
  %s8 = inlined_call_operand.hbm [shape: f32[1,32], index: 8, kind: input, shape index: {}]
  %s9 = inlined_call_operand.hbm [shape: f32[32,32], index: 9, kind: input, shape index: {}]
  %s10 = inlined_call_operand.hbm [shape: f32[1,32], index: 10, kind: input, shape index: {}]
  %s11 = inlined_call_operand.hbm [shape: f32[1,32], index: 11, kind: input, shape index: {}]
  %s12 = inlined_call_operand.hbm [shape: f32[32,32], index: 12, kind: input, shape index: {}]
  %s13 = inlined_call_operand.hbm [shape: f32[1,32], index: 13, kind: input, shape index: {}]
  %s14 = inlined_call_operand.hbm [shape: f32[32,32], index: 14, kind: input, shape index: {}]
  %s15 = inlined_call_operand.hbm [shape: f32[1,32], index: 15, kind: input, shape index: {}]
  %s16 = inlined_call_operand.hbm [shape: f32[1,32], index: 16, kind: input, shape index: {}]
  %s17 = inlined_call_operand.hbm [shape: f32[8,32], index: 17, kind: input, shape index: {}]
  %s18 = inlined_call_operand.vmem [shape: f32[32,32], index: 18, kind: input, shape index: {}]
  %s19 = inlined_call_operand.hbm [shape: f32[32,32], index: 19, kind: input, shape index: {}]
  %s20 = inlined_call_operand.hbm [shape: f32[32,32], index: 20, kind: input, shape index: {}]
  %s21 = inlined_call_operand.vmem [shape: f32[1,32], index: 21, kind: input, shape index: {}]
  %s22 = inlined_call_operand.hbm [shape: f32[32,128], index: 22, kind: input, shape index: {}]
  %s23 = inlined_call_operand.vmem [shape: f32[1,128], index: 23, kind: input, shape index: {}]
  %s24 = inlined_call_operand.hbm [shape: f32[8,128], index: 24, kind: output, shape index: {}]
  %s25 = sld [smem:[#allocation0]]
  $region182: #{tpu_custom_call.1} parent=0
    _
  %s27 = ssub.s32 1, %s25
  %s28 = scalar_select 0, %s27, %s25
  $region1: #{tpu_custom_call.1} parent=0
    #allocation2 [shape = 'u8[8192]{0}', space=vmem, size = 0x2000, scoped, tag = 'input window, operand 2, single buffered']
    #allocation3 [shape = 's32[1]{0}', space=sflag, size = 0x4, scoped, tag = 'scoped memory for tpu_custom_call.1']
    #allocation4 [shape = 's32[1]{0}', space=sflag, size = 0x4, scoped, tag = 'scoped memory for tpu_custom_call.1']
    #allocation5 [shape = 'u8[512]{0}', space=vmem, size = 0x400, scoped, tag = 'input window, operand 3, single buffered']
    #allocation6 [shape = 's32[1]{0}', space=sflag, size = 0x4, scoped, tag = 'scoped memory for tpu_custom_call.1']
    #allocation7 [shape = 'u8[16384]{0}', space=vmem, size = 0x4000, scoped, tag = 'input window, operand 4, single buffered']
    #allocation8 [shape = 'u8[512]{0}', space=vmem, size = 0x400, scoped, tag = 'input window, operand 5, single buffered']
    #allocation9 [shape = 's32[1]{0}', space=sflag, size = 0x4, scoped, tag = 'scoped memory for tpu_custom_call.1']
    #allocation10 [shape = 'u8[512]{0}', space=vmem, size = 0x400, scoped, tag = 'input window, operand 6, single buffered']
    #allocation11 [shape = 'u8[16384]{0}', space=vmem, size = 0x4000, scoped, tag = 'input window, operand 7, single buffered']
    #allocation12 [shape = 's32[1]{0}', space=sflag, size = 0x4, scoped, tag = 'scoped memory for tpu_custom_call.1']
    #allocation13 [shape = 'u8[512]{0}', space=vmem, size = 0x400, scoped, tag = 'input window, operand 8, single buffered']
    #allocation14 [shape = 'u8[16384]{0}', space=vmem, size = 0x4000, scoped, tag = 'input window, operand 9, single buffered']
    #allocation15 [shape = 's32[1]{0}', space=sflag, size = 0x4, scoped, tag = 'scoped memory for tpu_custom_call.1']
    #allocation16 [shape = 'u8[512]{0}', space=vmem, size = 0x400, scoped, tag = 'input window, operand 10, single buffered']
    #allocation17 [shape = 'u8[512]{0}', space=vmem, size = 0x400, scoped, tag = 'input window, operand 11, single buffered']
    #allocation18 [shape = 's32[1]{0}', space=sflag, size = 0x4, scoped, tag = 'scoped memory for tpu_custom_call.1']
    #allocation19 [shape = 'u8[16384]{0}', space=vmem, size = 0x4000, scoped, tag = 'input window, operand 12, single buffered']
    #allocation20 [shape = 'u8[512]{0}', space=vmem, size = 0x400, scoped, tag = 'input window, operand 13, single buffered']
    #allocation21 [shape = 's32[1]{0}', space=sflag, size = 0x4, scoped, tag = 'scoped memory for tpu_custom_call.1']
    #allocation22 [shape = 'u8[16384]{0}', space=vmem, size = 0x4000, scoped, tag = 'input window, operand 14, single buffered']
    #allocation23 [shape = 'u8[512]{0}', space=vmem, size = 0x400, scoped, tag = 'input window, operand 15, single buffered']
    #allocation24 [shape = 's32[1]{0}', space=sflag, size = 0x4, scoped, tag = 'scoped memory for tpu_custom_call.1']
    #allocation25 [shape = 'u8[512]{0}', space=vmem, size = 0x400, scoped, tag = 'input window, operand 16, single buffered']
    #allocation26 [shape = 'u8[4096]{0}', space=vmem, size = 0x1000, scoped, tag = 'input window, operand 17, single buffered']
    #allocation27 [shape = 's32[1]{0}', space=sflag, size = 0x4, scoped, tag = 'scoped memory for tpu_custom_call.1']
    #allocation28 [shape = 'u8[16384]{0}', space=vmem, size = 0x4000, scoped, tag = 'input window, operand 19, single buffered']
    #allocation29 [shape = 'u8[16384]{0}', space=vmem, size = 0x4000, scoped, tag = 'input window, operand 20, single buffered']
    #allocation30 [shape = 's32[1]{0}', space=sflag, size = 0x4, scoped, tag = 'scoped memory for tpu_custom_call.1']
    #allocation31 [shape = 'u8[16384]{0}', space=vmem, size = 0x4000, scoped, tag = 'input window, operand 22, single buffered']
    #allocation32 [shape = 'u8[4096]{0}', space=vmem, size = 0x1000, scoped, tag = 'output window, operand 0, single buffered']
    %29 = vsyncpa [#allocation3], 0
    %30 = vsyncpa [#allocation6], 0
    %31 = vsyncpa [#allocation9], 0
    %32 = vsyncpa [#allocation12], 0
    %33 = vsyncpa [#allocation15], 0
    %34 = vsyncpa [#allocation18], 0
    %35 = vsyncpa [#allocation21], 0
    %36 = vsyncpa [#allocation24], 0
    %37 = vsyncpa [#allocation27], 0
    %38 = vsyncpa [#allocation30], 0
    %39 = vsyncpa [#allocation4], 0
    // Predicated region
    $region2: #{tpu_custom_call.1} parent=1 // pred_check
      _
    $region3: #{tpu_custom_call.1} parent=1 // pred_check_branch
      %41 = sbr.rel (0) target = $region5
    $region4: #{tpu_custom_call.1} parent=1 // pred_region
      _
    $region5: #{tpu_custom_call.1} parent=1 // pred_fallthru
      _
    // Predicated region
    $region6: #{tpu_custom_call.1} parent=1 // pred_check
      _
    $region7: #{tpu_custom_call.1} parent=1 // pred_check_branch
      %43 = sbr.rel (0) target = $region9
    $region8: #{tpu_custom_call.1} parent=1 // pred_region
      _
    $region9: #{tpu_custom_call.1} parent=1 // pred_fallthru
      _
    // Predicated region
    $region10: #{tpu_custom_call.1} parent=1 // pred_check
      _
    $region11: #{tpu_custom_call.1} parent=1 // pred_check_branch
      %45 = sbr.rel (0) target = $region13
    $region12: #{tpu_custom_call.1} parent=1 // pred_region
      %47 = vsyncadd [#allocation3], 0
      %s48 = sshll.u32 %s2, 4
      %s49 = int_to_ptr.hbm [resolvable:$true] %s48
      %s50 = sshll.u32 [#allocation2], 4
      %s51 = int_to_ptr.vmem [resolvable:$true] %s50
      %56 = dma.hbm_to_vmem [thread:$0]  %s49, 256, %s51, [#allocation3], 128, 128, 8
    $region13: #{tpu_custom_call.1} parent=1 // pred_fallthru
      _
    // Predicated region
    $region14: #{tpu_custom_call.1} parent=1 // pred_check
      _
    $region15: #{tpu_custom_call.1} parent=1 // pred_check_branch
      %58 = sbr.rel (0) target = $region17
    $region16: #{tpu_custom_call.1} parent=1 // pred_region
      %60 = vsyncadd [#allocation6], 0
      %s62 = sshll.u32 %s3, 4
      %s63 = int_to_ptr.hbm [resolvable:$true] %s62
      %s64 = sshll.u32 [#allocation5], 4
      %s65 = int_to_ptr.vmem [resolvable:$true] %s64
      %67 = dma.hbm_to_vmem [thread:$0]  %s63, 16, %s65, [#allocation6]
    $region17: #{tpu_custom_call.1} parent=1 // pred_fallthru
      _
    // Predicated region
    $region18: #{tpu_custom_call.1} parent=1 // pred_check
      _
    $region19: #{tpu_custom_call.1} parent=1 // pred_check_branch
      %69 = sbr.rel (0) target = $region21
    $region20: #{tpu_custom_call.1} parent=1 // pred_region
      %71 = vsyncadd [#allocation6], 0
      %s72 = sshll.u32 %s4, 4
      %s73 = int_to_ptr.hbm [resolvable:$true] %s72
      %s74 = sshll.u32 [#allocation7], 4
      %s75 = int_to_ptr.vmem [resolvable:$true] %s74
      %80 = dma.hbm_to_vmem [thread:$0]  %s73, 512, %s75, [#allocation6], 128, 128, 8
    $region21: #{tpu_custom_call.1} parent=1 // pred_fallthru
      _
    // Predicated region
    $region22: #{tpu_custom_call.1} parent=1 // pred_check
      _
    $region23: #{tpu_custom_call.1} parent=1 // pred_check_branch
      %82 = sbr.rel (0) target = $region25
    $region24: #{tpu_custom_call.1} parent=1 // pred_region
      %84 = vsyncadd [#allocation9], 0
      %s86 = sshll.u32 %s5, 4
      %s87 = int_to_ptr.hbm [resolvable:$true] %s86
      %s88 = sshll.u32 [#allocation8], 4
      %s89 = int_to_ptr.vmem [resolvable:$true] %s88
      %91 = dma.hbm_to_vmem [thread:$0]  %s87, 16, %s89, [#allocation9]
    $region25: #{tpu_custom_call.1} parent=1 // pred_fallthru
      _
    // Predicated region
    $region26: #{tpu_custom_call.1} parent=1 // pred_check
      _
    $region27: #{tpu_custom_call.1} parent=1 // pred_check_branch
      %93 = sbr.rel (0) target = $region29
    $region28: #{tpu_custom_call.1} parent=1 // pred_region
      %95 = vsyncadd [#allocation9], 0
      %s97 = sshll.u32 %s6, 4
      %s98 = int_to_ptr.hbm [resolvable:$true] %s97
      %s99 = sshll.u32 [#allocation10], 4
      %s100 = int_to_ptr.vmem [resolvable:$true] %s99
      %102 = dma.hbm_to_vmem [thread:$0]  %s98, 16, %s100, [#allocation9]
    $region29: #{tpu_custom_call.1} parent=1 // pred_fallthru
      _
    // Predicated region
    $region30: #{tpu_custom_call.1} parent=1 // pred_check
      _
    $region31: #{tpu_custom_call.1} parent=1 // pred_check_branch
      %104 = sbr.rel (0) target = $region33
    $region32: #{tpu_custom_call.1} parent=1 // pred_region
      %106 = vsyncadd [#allocation12], 0
      %s107 = sshll.u32 %s7, 4
      %s108 = int_to_ptr.hbm [resolvable:$true] %s107
      %s109 = sshll.u32 [#allocation11], 4
      %s110 = int_to_ptr.vmem [resolvable:$true] %s109
      %115 = dma.hbm_to_vmem [thread:$0]  %s108, 512, %s110, [#allocation12], 128, 128, 8
    $region33: #{tpu_custom_call.1} parent=1 // pred_fallthru
      _
    // Predicated region
    $region34: #{tpu_custom_call.1} parent=1 // pred_check
      _
    $region35: #{tpu_custom_call.1} parent=1 // pred_check_branch
      %117 = sbr.rel (0) target = $region37
    $region36: #{tpu_custom_call.1} parent=1 // pred_region
      %119 = vsyncadd [#allocation12], 0
      %s121 = sshll.u32 %s8, 4
      %s122 = int_to_ptr.hbm [resolvable:$true] %s121
      %s123 = sshll.u32 [#allocation13], 4
      %s124 = int_to_ptr.vmem [resolvable:$true] %s123
      %126 = dma.hbm_to_vmem [thread:$0]  %s122, 16, %s124, [#allocation12]
    $region37: #{tpu_custom_call.1} parent=1 // pred_fallthru
      _
    // Predicated region
    $region38: #{tpu_custom_call.1} parent=1 // pred_check
      _
    $region39: #{tpu_custom_call.1} parent=1 // pred_check_branch
      %128 = sbr.rel (0) target = $region41
    $region40: #{tpu_custom_call.1} parent=1 // pred_region
      %130 = vsyncadd [#allocation15], 0
      %s131 = sshll.u32 %s9, 4
      %s132 = int_to_ptr.hbm [resolvable:$true] %s131
      %s133 = sshll.u32 [#allocation14], 4
      %s134 = int_to_ptr.vmem [resolvable:$true] %s133
      %139 = dma.hbm_to_vmem [thread:$0]  %s132, 512, %s134, [#allocation15], 128, 128, 8
    $region41: #{tpu_custom_call.1} parent=1 // pred_fallthru
      _
    // Predicated region
    $region42: #{tpu_custom_call.1} parent=1 // pred_check
      _
    $region43: #{tpu_custom_call.1} parent=1 // pred_check_branch
      %141 = sbr.rel (0) target = $region45
    $region44: #{tpu_custom_call.1} parent=1 // pred_region
      %143 = vsyncadd [#allocation15], 0
      %s145 = sshll.u32 %s10, 4
      %s146 = int_to_ptr.hbm [resolvable:$true] %s145
      %s147 = sshll.u32 [#allocation16], 4
      %s148 = int_to_ptr.vmem [resolvable:$true] %s147
      %150 = dma.hbm_to_vmem [thread:$0]  %s146, 16, %s148, [#allocation15]
    $region45: #{tpu_custom_call.1} parent=1 // pred_fallthru
      _
    // Predicated region
    $region46: #{tpu_custom_call.1} parent=1 // pred_check
      _
    $region47: #{tpu_custom_call.1} parent=1 // pred_check_branch
      %152 = sbr.rel (0) target = $region49
    $region48: #{tpu_custom_call.1} parent=1 // pred_region
      %154 = vsyncadd [#allocation18], 0
      %s156 = sshll.u32 %s11, 4
      %s157 = int_to_ptr.hbm [resolvable:$true] %s156
      %s158 = sshll.u32 [#allocation17], 4
      %s159 = int_to_ptr.vmem [resolvable:$true] %s158
      %161 = dma.hbm_to_vmem [thread:$0]  %s157, 16, %s159, [#allocation18]
    $region49: #{tpu_custom_call.1} parent=1 // pred_fallthru
      _
    // Predicated region
    $region50: #{tpu_custom_call.1} parent=1 // pred_check
      _
    $region51: #{tpu_custom_call.1} parent=1 // pred_check_branch
      %163 = sbr.rel (0) target = $region53
    $region52: #{tpu_custom_call.1} parent=1 // pred_region
      %165 = vsyncadd [#allocation18], 0
      %s166 = sshll.u32 %s12, 4
      %s167 = int_to_ptr.hbm [resolvable:$true] %s166
      %s168 = sshll.u32 [#allocation19], 4
      %s169 = int_to_ptr.vmem [resolvable:$true] %s168
      %174 = dma.hbm_to_vmem [thread:$0]  %s167, 512, %s169, [#allocation18], 128, 128, 8
    $region53: #{tpu_custom_call.1} parent=1 // pred_fallthru
      _
    // Predicated region
    $region54: #{tpu_custom_call.1} parent=1 // pred_check
      _
    $region55: #{tpu_custom_call.1} parent=1 // pred_check_branch
      %176 = sbr.rel (0) target = $region57
    $region56: #{tpu_custom_call.1} parent=1 // pred_region
      %178 = vsyncadd [#allocation21], 0
      %s180 = sshll.u32 %s13, 4
      %s181 = int_to_ptr.hbm [resolvable:$true] %s180
      %s182 = sshll.u32 [#allocation20], 4
      %s183 = int_to_ptr.vmem [resolvable:$true] %s182
      %185 = dma.hbm_to_vmem [thread:$0]  %s181, 16, %s183, [#allocation21]
    $region57: #{tpu_custom_call.1} parent=1 // pred_fallthru
      _
    // Predicated region
    $region58: #{tpu_custom_call.1} parent=1 // pred_check
      _
    $region59: #{tpu_custom_call.1} parent=1 // pred_check_branch
      %187 = sbr.rel (0) target = $region61
    $region60: #{tpu_custom_call.1} parent=1 // pred_region
      %189 = vsyncadd [#allocation21], 0
      %s190 = sshll.u32 %s14, 4
      %s191 = int_to_ptr.hbm [resolvable:$true] %s190
      %s192 = sshll.u32 [#allocation22], 4
      %s193 = int_to_ptr.vmem [resolvable:$true] %s192
      %198 = dma.hbm_to_vmem [thread:$0]  %s191, 512, %s193, [#allocation21], 128, 128, 8
    $region61: #{tpu_custom_call.1} parent=1 // pred_fallthru
      _
    // Predicated region
    $region62: #{tpu_custom_call.1} parent=1 // pred_check
      _
    $region63: #{tpu_custom_call.1} parent=1 // pred_check_branch
      %200 = sbr.rel (0) target = $region65
    $region64: #{tpu_custom_call.1} parent=1 // pred_region
      %202 = vsyncadd [#allocation24], 0
      %s204 = sshll.u32 %s15, 4
      %s205 = int_to_ptr.hbm [resolvable:$true] %s204
      %s206 = sshll.u32 [#allocation23], 4
      %s207 = int_to_ptr.vmem [resolvable:$true] %s206
      %209 = dma.hbm_to_vmem [thread:$0]  %s205, 16, %s207, [#allocation24]
    $region65: #{tpu_custom_call.1} parent=1 // pred_fallthru
      _
    // Predicated region
    $region66: #{tpu_custom_call.1} parent=1 // pred_check
      _
    $region67: #{tpu_custom_call.1} parent=1 // pred_check_branch
      %211 = sbr.rel (0) target = $region69
    $region68: #{tpu_custom_call.1} parent=1 // pred_region
      %213 = vsyncadd [#allocation24], 0
      %s215 = sshll.u32 %s16, 4
      %s216 = int_to_ptr.hbm [resolvable:$true] %s215
      %s217 = sshll.u32 [#allocation25], 4
      %s218 = int_to_ptr.vmem [resolvable:$true] %s217
      %220 = dma.hbm_to_vmem [thread:$0]  %s216, 16, %s218, [#allocation24]
    $region69: #{tpu_custom_call.1} parent=1 // pred_fallthru
      _
    // Predicated region
    $region70: #{tpu_custom_call.1} parent=1 // pred_check
      _
    $region71: #{tpu_custom_call.1} parent=1 // pred_check_branch
      %222 = sbr.rel (0) target = $region73
    $region72: #{tpu_custom_call.1} parent=1 // pred_region
      %224 = vsyncadd [#allocation27], 0
      %s226 = sshll.u32 %s17, 4
      %s227 = int_to_ptr.hbm [resolvable:$true] %s226
      %s228 = sshll.u32 [#allocation26], 4
      %s229 = int_to_ptr.vmem [resolvable:$true] %s228
      %231 = dma.hbm_to_vmem [thread:$0]  %s227, 128, %s229, [#allocation27]
    $region73: #{tpu_custom_call.1} parent=1 // pred_fallthru
      _
    // Predicated region
    $region74: #{tpu_custom_call.1} parent=1 // pred_check
      _
    $region75: #{tpu_custom_call.1} parent=1 // pred_check_branch
      %233 = sbr.rel (0) target = $region77
    $region76: #{tpu_custom_call.1} parent=1 // pred_region
      _
    $region77: #{tpu_custom_call.1} parent=1 // pred_fallthru
      _
    // Predicated region
    $region78: #{tpu_custom_call.1} parent=1 // pred_check
      _
    $region79: #{tpu_custom_call.1} parent=1 // pred_check_branch
      %235 = sbr.rel (0) target = $region81
    $region80: #{tpu_custom_call.1} parent=1 // pred_region
      %237 = vsyncadd [#allocation27], 0
      %s238 = sshll.u32 %s19, 4
      %s239 = int_to_ptr.hbm [resolvable:$true] %s238
      %s240 = sshll.u32 [#allocation28], 4
      %s241 = int_to_ptr.vmem [resolvable:$true] %s240
      %246 = dma.hbm_to_vmem [thread:$0]  %s239, 512, %s241, [#allocation27], 128, 128, 8
    $region81: #{tpu_custom_call.1} parent=1 // pred_fallthru
      _
    // Predicated region
    $region82: #{tpu_custom_call.1} parent=1 // pred_check
      _
    $region83: #{tpu_custom_call.1} parent=1 // pred_check_branch
      %248 = sbr.rel (0) target = $region85
    $region84: #{tpu_custom_call.1} parent=1 // pred_region
      %250 = vsyncadd [#allocation30], 0
      %s251 = sshll.u32 %s20, 4
      %s252 = int_to_ptr.hbm [resolvable:$true] %s251
      %s253 = sshll.u32 [#allocation29], 4
      %s254 = int_to_ptr.vmem [resolvable:$true] %s253
      %259 = dma.hbm_to_vmem [thread:$0]  %s252, 512, %s254, [#allocation30], 128, 128, 8
    $region85: #{tpu_custom_call.1} parent=1 // pred_fallthru
      _
    // Predicated region
    $region86: #{tpu_custom_call.1} parent=1 // pred_check
      _
    $region87: #{tpu_custom_call.1} parent=1 // pred_check_branch
      %261 = sbr.rel (0) target = $region89
    $region88: #{tpu_custom_call.1} parent=1 // pred_region
      _
    $region89: #{tpu_custom_call.1} parent=1 // pred_fallthru
      _
    // Predicated region
    $region90: #{tpu_custom_call.1} parent=1 // pred_check
      _
    $region91: #{tpu_custom_call.1} parent=1 // pred_check_branch
      %263 = sbr.rel (0) target = $region93
    $region92: #{tpu_custom_call.1} parent=1 // pred_region
      %265 = vsyncadd [#allocation30], 0
      %s266 = sshll.u32 %s22, 4
      %s267 = int_to_ptr.hbm [resolvable:$true] %s266
      %s268 = sshll.u32 [#allocation31], 4
      %s269 = int_to_ptr.vmem [resolvable:$true] %s268
      %274 = dma.hbm_to_vmem [thread:$0]  %s267, 512, %s269, [#allocation30], 128, 128, 8
    $region93: #{tpu_custom_call.1} parent=1 // pred_fallthru
      _
    // Predicated region
    $region94: #{tpu_custom_call.1} parent=1 // pred_check
      _
    $region95: #{tpu_custom_call.1} parent=1 // pred_check_branch
      %276 = sbr.rel (0) target = $region97
    $region96: #{tpu_custom_call.1} parent=1 // pred_region
      _
    $region97: #{tpu_custom_call.1} parent=1 // pred_fallthru
      _
    // Predicated region
    $region98: #{tpu_custom_call.1} parent=1 // pred_check
      _
    $region99: #{tpu_custom_call.1} parent=1 // pred_check_branch
      %278 = sbr.rel (0) target = $region101
    $region100: #{tpu_custom_call.1} parent=1 // pred_region
      %280 = dma.done [#allocation3], 256
    $region101: #{tpu_custom_call.1} parent=1 // pred_fallthru
      _
    // Predicated region
    $region102: #{tpu_custom_call.1} parent=1 // pred_check
      _
    $region103: #{tpu_custom_call.1} parent=1 // pred_check_branch
      %282 = sbr.rel (0) target = $region105
    $region104: #{tpu_custom_call.1} parent=1 // pred_region
      %284 = dma.done [#allocation6], 16
    $region105: #{tpu_custom_call.1} parent=1 // pred_fallthru
      _
    // Predicated region
    $region106: #{tpu_custom_call.1} parent=1 // pred_check
      _
    $region107: #{tpu_custom_call.1} parent=1 // pred_check_branch
      %286 = sbr.rel (0) target = $region109
    $region108: #{tpu_custom_call.1} parent=1 // pred_region
      %288 = dma.done [#allocation6], 512
    $region109: #{tpu_custom_call.1} parent=1 // pred_fallthru
      _
    // Predicated region
    $region110: #{tpu_custom_call.1} parent=1 // pred_check
      _
    $region111: #{tpu_custom_call.1} parent=1 // pred_check_branch
      %290 = sbr.rel (0) target = $region113
    $region112: #{tpu_custom_call.1} parent=1 // pred_region
      %292 = dma.done [#allocation9], 16
    $region113: #{tpu_custom_call.1} parent=1 // pred_fallthru
      _
    // Predicated region
    $region114: #{tpu_custom_call.1} parent=1 // pred_check
      _
    $region115: #{tpu_custom_call.1} parent=1 // pred_check_branch
      %294 = sbr.rel (0) target = $region117
    $region116: #{tpu_custom_call.1} parent=1 // pred_region
      %296 = dma.done [#allocation9], 16
    $region117: #{tpu_custom_call.1} parent=1 // pred_fallthru
      _
    // Predicated region
    $region118: #{tpu_custom_call.1} parent=1 // pred_check
      _
    $region119: #{tpu_custom_call.1} parent=1 // pred_check_branch
      %298 = sbr.rel (0) target = $region121
    $region120: #{tpu_custom_call.1} parent=1 // pred_region
      %300 = dma.done [#allocation12], 512
    $region121: #{tpu_custom_call.1} parent=1 // pred_fallthru
      _
    // Predicated region
    $region122: #{tpu_custom_call.1} parent=1 // pred_check
      _
    $region123: #{tpu_custom_call.1} parent=1 // pred_check_branch
      %302 = sbr.rel (0) target = $region125
    $region124: #{tpu_custom_call.1} parent=1 // pred_region
      %304 = dma.done [#allocation12], 16
    $region125: #{tpu_custom_call.1} parent=1 // pred_fallthru
      _
    // Predicated region
    $region126: #{tpu_custom_call.1} parent=1 // pred_check
      _
    $region127: #{tpu_custom_call.1} parent=1 // pred_check_branch
      %306 = sbr.rel (0) target = $region129
    $region128: #{tpu_custom_call.1} parent=1 // pred_region
      %308 = dma.done [#allocation15], 512
    $region129: #{tpu_custom_call.1} parent=1 // pred_fallthru
      _
    // Predicated region
    $region130: #{tpu_custom_call.1} parent=1 // pred_check
      _
    $region131: #{tpu_custom_call.1} parent=1 // pred_check_branch
      %310 = sbr.rel (0) target = $region133
    $region132: #{tpu_custom_call.1} parent=1 // pred_region
      %312 = dma.done [#allocation15], 16
    $region133: #{tpu_custom_call.1} parent=1 // pred_fallthru
      _
    // Predicated region
    $region134: #{tpu_custom_call.1} parent=1 // pred_check
      _
    $region135: #{tpu_custom_call.1} parent=1 // pred_check_branch
      %314 = sbr.rel (0) target = $region137
    $region136: #{tpu_custom_call.1} parent=1 // pred_region
      %316 = dma.done [#allocation18], 16
    $region137: #{tpu_custom_call.1} parent=1 // pred_fallthru
      _
    // Predicated region
    $region138: #{tpu_custom_call.1} parent=1 // pred_check
      _
    $region139: #{tpu_custom_call.1} parent=1 // pred_check_branch
      %318 = sbr.rel (0) target = $region141
    $region140: #{tpu_custom_call.1} parent=1 // pred_region
      %320 = dma.done [#allocation18], 512
    $region141: #{tpu_custom_call.1} parent=1 // pred_fallthru
      _
    // Predicated region
    $region142: #{tpu_custom_call.1} parent=1 // pred_check
      _
    $region143: #{tpu_custom_call.1} parent=1 // pred_check_branch
      %322 = sbr.rel (0) target = $region145
    $region144: #{tpu_custom_call.1} parent=1 // pred_region
      %324 = dma.done [#allocation21], 16
    $region145: #{tpu_custom_call.1} parent=1 // pred_fallthru
      _
    // Predicated region
    $region146: #{tpu_custom_call.1} parent=1 // pred_check
      _
    $region147: #{tpu_custom_call.1} parent=1 // pred_check_branch
      %326 = sbr.rel (0) target = $region149
    $region148: #{tpu_custom_call.1} parent=1 // pred_region
      %328 = dma.done [#allocation21], 512
    $region149: #{tpu_custom_call.1} parent=1 // pred_fallthru
      _
    // Predicated region
    $region150: #{tpu_custom_call.1} parent=1 // pred_check
      _
    $region151: #{tpu_custom_call.1} parent=1 // pred_check_branch
      %330 = sbr.rel (0) target = $region153
    $region152: #{tpu_custom_call.1} parent=1 // pred_region
      %332 = dma.done [#allocation24], 16
    $region153: #{tpu_custom_call.1} parent=1 // pred_fallthru
      _
    // Predicated region
    $region154: #{tpu_custom_call.1} parent=1 // pred_check
      _
    $region155: #{tpu_custom_call.1} parent=1 // pred_check_branch
      %334 = sbr.rel (0) target = $region157
    $region156: #{tpu_custom_call.1} parent=1 // pred_region
      %336 = dma.done [#allocation24], 16
    $region157: #{tpu_custom_call.1} parent=1 // pred_fallthru
      _
    // Predicated region
    $region158: #{tpu_custom_call.1} parent=1 // pred_check
      _
    $region159: #{tpu_custom_call.1} parent=1 // pred_check_branch
      %338 = sbr.rel (0) target = $region161
    $region160: #{tpu_custom_call.1} parent=1 // pred_region
      %340 = dma.done [#allocation27], 128
    $region161: #{tpu_custom_call.1} parent=1 // pred_fallthru
      _
    // Predicated region
    $region162: #{tpu_custom_call.1} parent=1 // pred_check
      _
    $region163: #{tpu_custom_call.1} parent=1 // pred_check_branch
      %342 = sbr.rel (0) target = $region165
    $region164: #{tpu_custom_call.1} parent=1 // pred_region
      %344 = dma.done [#allocation27], 512
    $region165: #{tpu_custom_call.1} parent=1 // pred_fallthru
      _
    // Predicated region
    $region166: #{tpu_custom_call.1} parent=1 // pred_check
      _
    $region167: #{tpu_custom_call.1} parent=1 // pred_check_branch
      %346 = sbr.rel (0) target = $region169
    $region168: #{tpu_custom_call.1} parent=1 // pred_region
      %348 = dma.done [#allocation30], 512
    $region169: #{tpu_custom_call.1} parent=1 // pred_fallthru
      _
    // Predicated region
    $region170: #{tpu_custom_call.1} parent=1 // pred_check
      _
    $region171: #{tpu_custom_call.1} parent=1 // pred_check_branch
      %350 = sbr.rel (0) target = $region173
    $region172: #{tpu_custom_call.1} parent=1 // pred_region
      %352 = dma.done [#allocation30], 512
    $region173: #{tpu_custom_call.1} parent=1 // pred_fallthru
      _
    %v353 = vld [vmem:[%s0] sm:$0xff]
    %v354 = vld [vmem:[%s0 + $0x8] sm:$0xff]
    %v355 = vld [vmem:[%s0 + $0x10] sm:$0xff]
    %v356 = vld [vmem:[%s0 + $0x18] sm:$0xff]
    %v357 = vld [vmem:[#allocation26] sm:$0xff]
    %v358 = vld [vmem:[%s1] sm:$0xff]
    %v359 = vld [vmem:[%s1 + $0x8] sm:$0xff]
    %v360 = vld [vmem:[%s1 + $0x10] sm:$0xff]
    %v361 = vld [vmem:[%s1 + $0x18] sm:$0xff]
    %v362 = vld [vmem:[%s21] sm:$0x1]
    %vm363 = vcmask 261120
    %v365 = vsel %vm363, %v353, 0
    %v368 = vsel %vm363, %v354, 0
    %v371 = vsel %vm363, %v355, 0
    %v374 = vsel %vm363, %v356, 0
    %376 = vmatpush.msra.mxu0 0.0
    %377 = vmatpush.msra.mxu0 0.0
    %378 = vmatpush.msra.mxu0 0.0
    %379 = vmatpush.msra.mxu0 0.0
    %380 = vmatpush.msra.mxu0 0.0
    %381 = vmatpush.msra.mxu0 0.0
    %382 = vmatpush.msra.mxu0 0.0
    %383 = vmatpush.msra.mxu0 0.0
    %384 = vmatpush.msra.mxu0 0.0
    %385 = vmatpush.msra.mxu0 0.0
    %386 = vmatpush.msra.mxu0 0.0
    %387 = vmatpush.msra.mxu0 0.0
    %388 = vmatpush.msra.mxu0 %v361
    %389 = vmatpush.msra.mxu0 %v360
    %390 = vmatpush.msra.mxu0 %v359
    %391 = vmatpush.msra.mxu0 %v358
    %392 = vmatmul.f32.gmra.mxu0 %v365
    %v393 = vpop.f32.mrf.mxu0
    %v394 = vadd.f32 %v358, %v393
    %395 = vmatmul.f32.gmra.mxu0 %v368
    %v396 = vpop.f32.mrf.mxu0
    %v397 = vadd.f32 %v359, %v396
    %398 = vmatmul.f32.gmra.mxu0 %v371
    %v399 = vpop.f32.mrf.mxu0
    %v400 = vadd.f32 %v360, %v399
    %401 = vmatmul.f32.gmra.mxu0 %v374
    %v402 = vpop.f32.mrf.mxu0
    %v403 = vadd.f32 %v361, %v402
    %404 = vdwg.mxu0
    %v405 = vld [vmem:[#allocation2] sm:$0xff]
    %v406 = vld [vmem:[#allocation2 + $0x8] sm:$0xff]
    %v407 = vld [vmem:[#allocation5] sm:$0x1]
    %v409 = vperm.slane %v407, 0
    %vm411 = vcmask 130048
    %v413 = vsel %vm411, %v394, 0
    %v416 = vsel %vm411, %v397, 0
    %v419 = vsel %vm411, %v400, 0
    %v422 = vsel %vm411, %v403, 0
    %424 = vmatpush.msra.mxu0 0.0
    %425 = vmatpush.msra.mxu0 0.0
    %426 = vmatpush.msra.mxu0 0.0
    %427 = vmatpush.msra.mxu0 0.0
    %428 = vmatpush.msra.mxu0 0.0
    %429 = vmatpush.msra.mxu0 0.0
    %430 = vmatpush.msra.mxu0 0.0
    %431 = vmatpush.msra.mxu0 0.0
    %432 = vmatpush.msra.mxu0 0.0
    %433 = vmatpush.msra.mxu0 0.0
    %434 = vmatpush.msra.mxu0 0.0
    %435 = vmatpush.msra.mxu0 0.0
    %436 = vmatpush.msra.mxu0 0.0
    %437 = vmatpush.msra.mxu0 0.0
    %438 = vmatpush.msra.mxu0 %v406
    %439 = vmatpush.msra.mxu0 %v405
    %440 = vmatmul.f32.gmra.mxu0 %v413
    %v441 = vpop.f32.mrf.mxu0
    %v442 = vadd.f32 %v409, %v441
    %443 = vmatmul.f32.gmra.mxu0 %v416
    %v444 = vpop.f32.mrf.mxu0
    %v445 = vadd.f32 %v409, %v444
    %446 = vmatmul.f32.gmra.mxu0 %v419
    %v447 = vpop.f32.mrf.mxu0
    %v448 = vadd.f32 %v409, %v447
    %449 = vmatmul.f32.gmra.mxu0 %v422
    %v450 = vpop.f32.mrf.mxu0
    %v451 = vadd.f32 %v409, %v450
    %452 = vdwg.mxu0
    %v453 = vmax.f32 %v442, 0.0
    %v454 = vmax.f32 %v445, 0.0
    %v455 = vmax.f32 %v448, 0.0
    %v456 = vmax.f32 %v451, 0.0
    %v457 = vld [vmem:[#allocation7] sm:$0xff]
    %v458 = vld [vmem:[#allocation7 + $0x8] sm:$0xff]
    %v459 = vld [vmem:[#allocation7 + $0x10] sm:$0xff]
    %v460 = vld [vmem:[#allocation7 + $0x18] sm:$0xff]
    %v461 = vld [vmem:[#allocation8] sm:$0x1]
    %v463 = vperm.slane %v461, 0
    %v466 = vsel %vm363, %v453, 0
    %v469 = vsel %vm363, %v454, 0
    %v472 = vsel %vm363, %v455, 0
    %v475 = vsel %vm363, %v456, 0
    %477 = vmatpush.msra.mxu0 0.0
    %478 = vmatpush.msra.mxu0 0.0
    %479 = vmatpush.msra.mxu0 0.0
    %480 = vmatpush.msra.mxu0 0.0
    %481 = vmatpush.msra.mxu0 0.0
    %482 = vmatpush.msra.mxu0 0.0
    %483 = vmatpush.msra.mxu0 0.0
    %484 = vmatpush.msra.mxu0 0.0
    %485 = vmatpush.msra.mxu0 0.0
    %486 = vmatpush.msra.mxu0 0.0
    %487 = vmatpush.msra.mxu0 0.0
    %488 = vmatpush.msra.mxu0 0.0
    %489 = vmatpush.msra.mxu0 %v460
    %490 = vmatpush.msra.mxu0 %v459
    %491 = vmatpush.msra.mxu0 %v458
    %492 = vmatpush.msra.mxu0 %v457
    %493 = vmatmul.f32.gmra.mxu0 %v466
    %v494 = vpop.f32.mrf.mxu0
    %v495 = vadd.f32 %v463, %v494
    %496 = vmatmul.f32.gmra.mxu0 %v469
    %v497 = vpop.f32.mrf.mxu0
    %v498 = vadd.f32 %v463, %v497
    %499 = vmatmul.f32.gmra.mxu0 %v472
    %v500 = vpop.f32.mrf.mxu0
    %v501 = vadd.f32 %v463, %v500
    %502 = vmatmul.f32.gmra.mxu0 %v475
    %v503 = vpop.f32.mrf.mxu0
    %v504 = vadd.f32 %v463, %v503
    %505 = vdwg.mxu0
    %v506 = vmax.f32 %v495, 0.0
    %v507 = vmax.f32 %v498, 0.0
    %v508 = vmax.f32 %v501, 0.0
    %v509 = vmax.f32 %v504, 0.0
    %v510 = vld [vmem:[#allocation10] sm:$0x1]
    %v512 = vperm.slane %v510, 0
    %v514 = vadd.f32 %v506, %v512
    %v515 = vadd.f32 %v507, %v512
    %v516 = vadd.f32 %v508, %v512
    %v517 = vadd.f32 %v509, %v512
    %v519 = vsel %vm363, %v357, 0
    %521 = vmatpush.msra.mxu0 0.0
    %522 = vmatpush.msra.mxu0 0.0
    %523 = vmatpush.msra.mxu0 0.0
    %524 = vmatpush.msra.mxu0 0.0
    %525 = vmatpush.msra.mxu0 0.0
    %526 = vmatpush.msra.mxu0 0.0
    %527 = vmatpush.msra.mxu0 0.0
    %528 = vmatpush.msra.mxu0 0.0
    %529 = vmatpush.msra.mxu0 0.0
    %530 = vmatpush.msra.mxu0 0.0
    %531 = vmatpush.msra.mxu0 0.0
    %532 = vmatpush.msra.mxu0 0.0
    %533 = vmatpush.msra.mxu0 %v517
    %534 = vmatpush.msra.mxu0 %v516
    %535 = vmatpush.msra.mxu0 %v515
    %536 = vmatpush.msra.mxu0 %v514
    %537 = vmatmul.f32.gmra.mxu0 %v519
    %v538 = vpop.f32.mrf.mxu0
    %v539 = vadd.f32 0.0, %v538
    %540 = vdwg.mxu0
    %v541 = vld [vmem:[%s18] sm:$0xff]
    %v542 = vld [vmem:[%s18 + $0x8] sm:$0xff]
    %v543 = vld [vmem:[%s18 + $0x10] sm:$0xff]
    %v544 = vld [vmem:[%s18 + $0x18] sm:$0xff]
    %v546 = vsel %vm363, %v539, 0
    %548 = vmatpush.msra.mxu0 0.0
    %549 = vmatpush.msra.mxu0 0.0
    %550 = vmatpush.msra.mxu0 0.0
    %551 = vmatpush.msra.mxu0 0.0
    %552 = vmatpush.msra.mxu0 0.0
    %553 = vmatpush.msra.mxu0 0.0
    %554 = vmatpush.msra.mxu0 0.0
    %555 = vmatpush.msra.mxu0 0.0
    %556 = vmatpush.msra.mxu0 0.0
    %557 = vmatpush.msra.mxu0 0.0
    %558 = vmatpush.msra.mxu0 0.0
    %559 = vmatpush.msra.mxu0 0.0
    %560 = vmatpush.msra.mxu0 %v544
    %561 = vmatpush.msra.mxu0 %v543
    %562 = vmatpush.msra.mxu0 %v542
    %563 = vmatpush.msra.mxu0 %v541
    %564 = vmatmul.f32.gmra.mxu0 %v546
    %v565 = vpop.f32.mrf.mxu0
    %v566 = vadd.f32 0.0, %v565
    %567 = vdwg.mxu0
    %v569 = vperm.slane %v362, 0
    %v571 = vadd.f32 %v569, %v566
    %572 = vmatpush.msra.mxu0 0.0
    %573 = vmatpush.msra.mxu0 0.0
    %574 = vmatpush.msra.mxu0 0.0
    %575 = vmatpush.msra.mxu0 0.0
    %576 = vmatpush.msra.mxu0 0.0
    %577 = vmatpush.msra.mxu0 0.0
    %578 = vmatpush.msra.mxu0 0.0
    %579 = vmatpush.msra.mxu0 0.0
    %580 = vmatpush.msra.mxu0 0.0
    %581 = vmatpush.msra.mxu0 0.0
    %582 = vmatpush.msra.mxu0 0.0
    %583 = vmatpush.msra.mxu0 0.0
    %584 = vmatpush.msra.mxu0 %v517
    %585 = vmatpush.msra.mxu0 %v516
    %586 = vmatpush.msra.mxu0 %v515
    %587 = vmatpush.msra.mxu0 %v514
    %588 = vmatmul.f32.gmra.mxu0 %v365
    %v589 = vpop.f32.mrf.mxu0
    %v590 = vadd.f32 %v514, %v589
    %591 = vmatmul.f32.gmra.mxu0 %v368
    %v592 = vpop.f32.mrf.mxu0
    %v593 = vadd.f32 %v515, %v592
    %594 = vmatmul.f32.gmra.mxu0 %v371
    %v595 = vpop.f32.mrf.mxu0
    %v596 = vadd.f32 %v516, %v595
    %597 = vmatmul.f32.gmra.mxu0 %v374
    %v598 = vpop.f32.mrf.mxu0
    %v599 = vadd.f32 %v517, %v598
    %600 = vdwg.mxu0
    %v601 = vld [vmem:[#allocation11] sm:$0xff]
    %v602 = vld [vmem:[#allocation11 + $0x8] sm:$0xff]
    %v603 = vld [vmem:[#allocation11 + $0x10] sm:$0xff]
    %v604 = vld [vmem:[#allocation11 + $0x18] sm:$0xff]
    %v605 = vld [vmem:[#allocation13] sm:$0x1]
    %v607 = vperm.slane %v605, 0
    %v610 = vsel %vm363, %v590, 0
    %v613 = vsel %vm363, %v593, 0
    %v616 = vsel %vm363, %v596, 0
    %v619 = vsel %vm363, %v599, 0
    %621 = vmatpush.msra.mxu0 0.0
    %622 = vmatpush.msra.mxu0 0.0
    %623 = vmatpush.msra.mxu0 0.0
    %624 = vmatpush.msra.mxu0 0.0
    %625 = vmatpush.msra.mxu0 0.0
    %626 = vmatpush.msra.mxu0 0.0
    %627 = vmatpush.msra.mxu0 0.0
    %628 = vmatpush.msra.mxu0 0.0
    %629 = vmatpush.msra.mxu0 0.0
    %630 = vmatpush.msra.mxu0 0.0
    %631 = vmatpush.msra.mxu0 0.0
    %632 = vmatpush.msra.mxu0 0.0
    %633 = vmatpush.msra.mxu0 %v604
    %634 = vmatpush.msra.mxu0 %v603
    %635 = vmatpush.msra.mxu0 %v602
    %636 = vmatpush.msra.mxu0 %v601
    %637 = vmatmul.f32.gmra.mxu0 %v610
    %v638 = vpop.f32.mrf.mxu0
    %v639 = vadd.f32 %v607, %v638
    %640 = vmatmul.f32.gmra.mxu0 %v613
    %v641 = vpop.f32.mrf.mxu0
    %v642 = vadd.f32 %v607, %v641
    %643 = vmatmul.f32.gmra.mxu0 %v616
    %v644 = vpop.f32.mrf.mxu0
    %v645 = vadd.f32 %v607, %v644
    %646 = vmatmul.f32.gmra.mxu0 %v619
    %v647 = vpop.f32.mrf.mxu0
    %v648 = vadd.f32 %v607, %v647
    %649 = vdwg.mxu0
    %v650 = vmax.f32 %v639, 0.0
    %v651 = vmax.f32 %v642, 0.0
    %v652 = vmax.f32 %v645, 0.0
    %v653 = vmax.f32 %v648, 0.0
    %v654 = vld [vmem:[#allocation14] sm:$0xff]
    %v655 = vld [vmem:[#allocation14 + $0x8] sm:$0xff]
    %v656 = vld [vmem:[#allocation14 + $0x10] sm:$0xff]
    %v657 = vld [vmem:[#allocation14 + $0x18] sm:$0xff]
    %v658 = vld [vmem:[#allocation16] sm:$0x1]
    %v660 = vperm.slane %v658, 0
    %v663 = vsel %vm363, %v650, 0
    %v666 = vsel %vm363, %v651, 0
    %v669 = vsel %vm363, %v652, 0
    %v672 = vsel %vm363, %v653, 0
    %674 = vmatpush.msra.mxu0 0.0
    %675 = vmatpush.msra.mxu0 0.0
    %676 = vmatpush.msra.mxu0 0.0
    %677 = vmatpush.msra.mxu0 0.0
    %678 = vmatpush.msra.mxu0 0.0
    %679 = vmatpush.msra.mxu0 0.0
    %680 = vmatpush.msra.mxu0 0.0
    %681 = vmatpush.msra.mxu0 0.0
    %682 = vmatpush.msra.mxu0 0.0
    %683 = vmatpush.msra.mxu0 0.0
    %684 = vmatpush.msra.mxu0 0.0
    %685 = vmatpush.msra.mxu0 0.0
    %686 = vmatpush.msra.mxu0 %v657
    %687 = vmatpush.msra.mxu0 %v656
    %688 = vmatpush.msra.mxu0 %v655
    %689 = vmatpush.msra.mxu0 %v654
    %690 = vmatmul.f32.gmra.mxu0 %v663
    %v691 = vpop.f32.mrf.mxu0
    %v692 = vadd.f32 %v660, %v691
    %693 = vmatmul.f32.gmra.mxu0 %v666
    %v694 = vpop.f32.mrf.mxu0
    %v695 = vadd.f32 %v660, %v694
    %696 = vmatmul.f32.gmra.mxu0 %v669
    %v697 = vpop.f32.mrf.mxu0
    %v698 = vadd.f32 %v660, %v697
    %699 = vmatmul.f32.gmra.mxu0 %v672
    %v700 = vpop.f32.mrf.mxu0
    %v701 = vadd.f32 %v660, %v700
    %702 = vdwg.mxu0
    %v703 = vmax.f32 %v692, 0.0
    %v704 = vmax.f32 %v695, 0.0
    %v705 = vmax.f32 %v698, 0.0
    %v706 = vmax.f32 %v701, 0.0
    %v707 = vld [vmem:[#allocation17] sm:$0x1]
    %v709 = vperm.slane %v707, 0
    %v711 = vadd.f32 %v703, %v709
    %v712 = vadd.f32 %v704, %v709
    %v713 = vadd.f32 %v705, %v709
    %v714 = vadd.f32 %v706, %v709
    %715 = vmatpush.msra.mxu0 0.0
    %716 = vmatpush.msra.mxu0 0.0
    %717 = vmatpush.msra.mxu0 0.0
    %718 = vmatpush.msra.mxu0 0.0
    %719 = vmatpush.msra.mxu0 0.0
    %720 = vmatpush.msra.mxu0 0.0
    %721 = vmatpush.msra.mxu0 0.0
    %722 = vmatpush.msra.mxu0 0.0
    %723 = vmatpush.msra.mxu0 0.0
    %724 = vmatpush.msra.mxu0 0.0
    %725 = vmatpush.msra.mxu0 0.0
    %726 = vmatpush.msra.mxu0 0.0
    %727 = vmatpush.msra.mxu0 %v714
    %728 = vmatpush.msra.mxu0 %v713
    %729 = vmatpush.msra.mxu0 %v712
    %730 = vmatpush.msra.mxu0 %v711
    %731 = vmatmul.f32.gmra.mxu0 %v519
    %v732 = vpop.f32.mrf.mxu0
    %v733 = vadd.f32 0.0, %v732
    %734 = vdwg.mxu0
    %v735 = vld [vmem:[#allocation28] sm:$0xff]
    %v736 = vld [vmem:[#allocation28 + $0x8] sm:$0xff]
    %v737 = vld [vmem:[#allocation28 + $0x10] sm:$0xff]
    %v738 = vld [vmem:[#allocation28 + $0x18] sm:$0xff]
    %v740 = vsel %vm363, %v733, 0
    %742 = vmatpush.msra.mxu0 0.0
    %743 = vmatpush.msra.mxu0 0.0
    %744 = vmatpush.msra.mxu0 0.0
    %745 = vmatpush.msra.mxu0 0.0
    %746 = vmatpush.msra.mxu0 0.0
    %747 = vmatpush.msra.mxu0 0.0
    %748 = vmatpush.msra.mxu0 0.0
    %749 = vmatpush.msra.mxu0 0.0
    %750 = vmatpush.msra.mxu0 0.0
    %751 = vmatpush.msra.mxu0 0.0
    %752 = vmatpush.msra.mxu0 0.0
    %753 = vmatpush.msra.mxu0 0.0
    %754 = vmatpush.msra.mxu0 %v738
    %755 = vmatpush.msra.mxu0 %v737
    %756 = vmatpush.msra.mxu0 %v736
    %757 = vmatpush.msra.mxu0 %v735
    %758 = vmatmul.f32.gmra.mxu0 %v740
    %v759 = vpop.f32.mrf.mxu0
    %v760 = vadd.f32 0.0, %v759
    %761 = vdwg.mxu0
    %v762 = vadd.f32 %v571, %v760
    %763 = vmatpush.msra.mxu0 0.0
    %764 = vmatpush.msra.mxu0 0.0
    %765 = vmatpush.msra.mxu0 0.0
    %766 = vmatpush.msra.mxu0 0.0
    %767 = vmatpush.msra.mxu0 0.0
    %768 = vmatpush.msra.mxu0 0.0
    %769 = vmatpush.msra.mxu0 0.0
    %770 = vmatpush.msra.mxu0 0.0
    %771 = vmatpush.msra.mxu0 0.0
    %772 = vmatpush.msra.mxu0 0.0
    %773 = vmatpush.msra.mxu0 0.0
    %774 = vmatpush.msra.mxu0 0.0
    %775 = vmatpush.msra.mxu0 %v714
    %776 = vmatpush.msra.mxu0 %v713
    %777 = vmatpush.msra.mxu0 %v712
    %778 = vmatpush.msra.mxu0 %v711
    %779 = vmatmul.f32.gmra.mxu0 %v365
    %v780 = vpop.f32.mrf.mxu0
    %v781 = vadd.f32 %v711, %v780
    %782 = vmatmul.f32.gmra.mxu0 %v368
    %v783 = vpop.f32.mrf.mxu0
    %v784 = vadd.f32 %v712, %v783
    %785 = vmatmul.f32.gmra.mxu0 %v371
    %v786 = vpop.f32.mrf.mxu0
    %v787 = vadd.f32 %v713, %v786
    %788 = vmatmul.f32.gmra.mxu0 %v374
    %v789 = vpop.f32.mrf.mxu0
    %v790 = vadd.f32 %v714, %v789
    %791 = vdwg.mxu0
    %v792 = vld [vmem:[#allocation19] sm:$0xff]
    %v793 = vld [vmem:[#allocation19 + $0x8] sm:$0xff]
    %v794 = vld [vmem:[#allocation19 + $0x10] sm:$0xff]
    %v795 = vld [vmem:[#allocation19 + $0x18] sm:$0xff]
    %v796 = vld [vmem:[#allocation20] sm:$0x1]
    %v798 = vperm.slane %v796, 0
    %v801 = vsel %vm363, %v781, 0
    %v804 = vsel %vm363, %v784, 0
    %v807 = vsel %vm363, %v787, 0
    %v810 = vsel %vm363, %v790, 0
    %812 = vmatpush.msra.mxu0 0.0
    %813 = vmatpush.msra.mxu0 0.0
    %814 = vmatpush.msra.mxu0 0.0
    %815 = vmatpush.msra.mxu0 0.0
    %816 = vmatpush.msra.mxu0 0.0
    %817 = vmatpush.msra.mxu0 0.0
    %818 = vmatpush.msra.mxu0 0.0
    %819 = vmatpush.msra.mxu0 0.0
    %820 = vmatpush.msra.mxu0 0.0
    %821 = vmatpush.msra.mxu0 0.0
    %822 = vmatpush.msra.mxu0 0.0
    %823 = vmatpush.msra.mxu0 0.0
    %824 = vmatpush.msra.mxu0 %v795
    %825 = vmatpush.msra.mxu0 %v794
    %826 = vmatpush.msra.mxu0 %v793
    %827 = vmatpush.msra.mxu0 %v792
    %828 = vmatmul.f32.gmra.mxu0 %v801
    %v829 = vpop.f32.mrf.mxu0
    %v830 = vadd.f32 %v798, %v829
    %831 = vmatmul.f32.gmra.mxu0 %v804
    %v832 = vpop.f32.mrf.mxu0
    %v833 = vadd.f32 %v798, %v832
    %834 = vmatmul.f32.gmra.mxu0 %v807
    %v835 = vpop.f32.mrf.mxu0
    %v836 = vadd.f32 %v798, %v835
    %837 = vmatmul.f32.gmra.mxu0 %v810
    %v838 = vpop.f32.mrf.mxu0
    %v839 = vadd.f32 %v798, %v838
    %840 = vdwg.mxu0
    %v841 = vmax.f32 %v830, 0.0
    %v842 = vmax.f32 %v833, 0.0
    %v843 = vmax.f32 %v836, 0.0
    %v844 = vmax.f32 %v839, 0.0
    %v845 = vld [vmem:[#allocation22] sm:$0xff]
    %v846 = vld [vmem:[#allocation22 + $0x8] sm:$0xff]
    %v847 = vld [vmem:[#allocation22 + $0x10] sm:$0xff]
    %v848 = vld [vmem:[#allocation22 + $0x18] sm:$0xff]
    %v849 = vld [vmem:[#allocation23] sm:$0x1]
    %v851 = vperm.slane %v849, 0
    %v854 = vsel %vm363, %v841, 0
    %v857 = vsel %vm363, %v842, 0
    %v860 = vsel %vm363, %v843, 0
    %v863 = vsel %vm363, %v844, 0
    %865 = vmatpush.msra.mxu0 0.0
    %866 = vmatpush.msra.mxu0 0.0
    %867 = vmatpush.msra.mxu0 0.0
    %868 = vmatpush.msra.mxu0 0.0
    %869 = vmatpush.msra.mxu0 0.0
    %870 = vmatpush.msra.mxu0 0.0
    %871 = vmatpush.msra.mxu0 0.0
    %872 = vmatpush.msra.mxu0 0.0
    %873 = vmatpush.msra.mxu0 0.0
    %874 = vmatpush.msra.mxu0 0.0
    %875 = vmatpush.msra.mxu0 0.0
    %876 = vmatpush.msra.mxu0 0.0
    %877 = vmatpush.msra.mxu0 %v848
    %878 = vmatpush.msra.mxu0 %v847
    %879 = vmatpush.msra.mxu0 %v846
    %880 = vmatpush.msra.mxu0 %v845
    %881 = vmatmul.f32.gmra.mxu0 %v854
    %v882 = vpop.f32.mrf.mxu0
    %v883 = vadd.f32 %v851, %v882
    %884 = vmatmul.f32.gmra.mxu0 %v857
    %v885 = vpop.f32.mrf.mxu0
    %v886 = vadd.f32 %v851, %v885
    %887 = vmatmul.f32.gmra.mxu0 %v860
    %v888 = vpop.f32.mrf.mxu0
    %v889 = vadd.f32 %v851, %v888
    %890 = vmatmul.f32.gmra.mxu0 %v863
    %v891 = vpop.f32.mrf.mxu0
    %v892 = vadd.f32 %v851, %v891
    %893 = vdwg.mxu0
    %v894 = vmax.f32 %v883, 0.0
    %v895 = vmax.f32 %v886, 0.0
    %v896 = vmax.f32 %v889, 0.0
    %v897 = vmax.f32 %v892, 0.0
    %v898 = vld [vmem:[#allocation25] sm:$0x1]
    %v900 = vperm.slane %v898, 0
    %v902 = vadd.f32 %v894, %v900
    %v903 = vadd.f32 %v895, %v900
    %v904 = vadd.f32 %v896, %v900
    %v905 = vadd.f32 %v897, %v900
    %906 = vmatpush.msra.mxu0 0.0
    %907 = vmatpush.msra.mxu0 0.0
    %908 = vmatpush.msra.mxu0 0.0
    %909 = vmatpush.msra.mxu0 0.0
    %910 = vmatpush.msra.mxu0 0.0
    %911 = vmatpush.msra.mxu0 0.0
    %912 = vmatpush.msra.mxu0 0.0
    %913 = vmatpush.msra.mxu0 0.0
    %914 = vmatpush.msra.mxu0 0.0
    %915 = vmatpush.msra.mxu0 0.0
    %916 = vmatpush.msra.mxu0 0.0
    %917 = vmatpush.msra.mxu0 0.0
    %918 = vmatpush.msra.mxu0 %v905
    %919 = vmatpush.msra.mxu0 %v904
    %920 = vmatpush.msra.mxu0 %v903
    %921 = vmatpush.msra.mxu0 %v902
    %922 = vmatmul.f32.gmra.mxu0 %v519
    %v923 = vpop.f32.mrf.mxu0
    %v924 = vadd.f32 0.0, %v923
    %925 = vdwg.mxu0
    %v926 = vld [vmem:[#allocation29] sm:$0xff]
    %v927 = vld [vmem:[#allocation29 + $0x8] sm:$0xff]
    %v928 = vld [vmem:[#allocation29 + $0x10] sm:$0xff]
    %v929 = vld [vmem:[#allocation29 + $0x18] sm:$0xff]
    %v931 = vsel %vm363, %v924, 0
    %933 = vmatpush.msra.mxu0 0.0
    %934 = vmatpush.msra.mxu0 0.0
    %935 = vmatpush.msra.mxu0 0.0
    %936 = vmatpush.msra.mxu0 0.0
    %937 = vmatpush.msra.mxu0 0.0
    %938 = vmatpush.msra.mxu0 0.0
    %939 = vmatpush.msra.mxu0 0.0
    %940 = vmatpush.msra.mxu0 0.0
    %941 = vmatpush.msra.mxu0 0.0
    %942 = vmatpush.msra.mxu0 0.0
    %943 = vmatpush.msra.mxu0 0.0
    %944 = vmatpush.msra.mxu0 0.0
    %945 = vmatpush.msra.mxu0 %v929
    %946 = vmatpush.msra.mxu0 %v928
    %947 = vmatpush.msra.mxu0 %v927
    %948 = vmatpush.msra.mxu0 %v926
    %949 = vmatmul.f32.gmra.mxu0 %v931
    %v950 = vpop.f32.mrf.mxu0
    %v951 = vadd.f32 0.0, %v950
    %952 = vdwg.mxu0
    %v953 = vadd.f32 %v762, %v951
    %v954 = vmax.f32 %v953, 0.0
    %v955 = vld [vmem:[#allocation31] sm:$0xff]
    %v956 = vld [vmem:[#allocation31 + $0x8] sm:$0xff]
    %v957 = vld [vmem:[#allocation31 + $0x10] sm:$0xff]
    %v958 = vld [vmem:[#allocation31 + $0x18] sm:$0xff]
    %v959 = vld [vmem:[%s23] sm:$0x1]
    %v961 = vperm.slane %v959, 0
    %v964 = vsel %vm363, %v954, 0
    %966 = vmatpush.msra.mxu0 0.0
    %967 = vmatpush.msra.mxu0 0.0
    %968 = vmatpush.msra.mxu0 0.0
    %969 = vmatpush.msra.mxu0 0.0
    %970 = vmatpush.msra.mxu0 0.0
    %971 = vmatpush.msra.mxu0 0.0
    %972 = vmatpush.msra.mxu0 0.0
    %973 = vmatpush.msra.mxu0 0.0
    %974 = vmatpush.msra.mxu0 0.0
    %975 = vmatpush.msra.mxu0 0.0
    %976 = vmatpush.msra.mxu0 0.0
    %977 = vmatpush.msra.mxu0 0.0
    %978 = vmatpush.msra.mxu0 %v958
    %979 = vmatpush.msra.mxu0 %v957
    %980 = vmatpush.msra.mxu0 %v956
    %981 = vmatpush.msra.mxu0 %v955
    %982 = vmatmul.f32.gmra.mxu0 %v964
    %v983 = vpop.f32.mrf.mxu0
    %v984 = vadd.f32 %v961, %v983
    %985 = vdwg.mxu0
    %986 = vmax.xlane.f32.xlu0 %v984
    %v987 = vpop.xlane.xlu0 %986
    %v988 = vsub.f32 %v984, %v987
    %v989 = vmul.f32 %v988, 1.442695
    %v990 = vpow.pop %v989
    %991 = vadd.xlane.f32.xlu0 %v990
    %v992 = vpop.xlane.xlu0 %991
    %v993 = vlog2.pop %v992
    %v994 = vmul.f32 %v993, 0.6931472
    %v995 = vsub.f32 %v988, %v994
    %996 = vst [vmem:[#allocation32] sm:$0xff] %v995
    // Predicated region
    $region174: #{tpu_custom_call.1} parent=1 // pred_check
      _
    $region175: #{tpu_custom_call.1} parent=1 // pred_check_branch
      %998 = sbr.rel (0) target = $region177
    $region176: #{tpu_custom_call.1} parent=1 // pred_region
      %1000 = vsyncadd [#allocation4], 0
      %s1002 = sshll.u32 [#allocation32], 4
      %s1003 = int_to_ptr.vmem [resolvable:$true] %s1002
      %s1004 = sshll.u32 %s24, 4
      %s1005 = int_to_ptr.hbm [resolvable:$true] %s1004
      %1007 = dma.vmem_to_hbm [thread:$0]  %s1003, 128, %s1005, [#allocation4]
    $region177: #{tpu_custom_call.1} parent=1 // pred_fallthru
      _
    // Predicated region
    $region178: #{tpu_custom_call.1} parent=1 // pred_check
      _
    $region179: #{tpu_custom_call.1} parent=1 // pred_check_branch
      %1009 = sbr.rel (0) target = $region181
    $region180: #{tpu_custom_call.1} parent=1 // pred_region
      %1011 = dma.done [#allocation4], 128
    $region181: #{tpu_custom_call.1} parent=1 // pred_fallthru
      _
    %1012 = vsyncpa [#allocation3], 1
    %1013 = vsyncpa [#allocation6], 1
    %1014 = vsyncpa [#allocation9], 1
    %1015 = vsyncpa [#allocation12], 1
    %1016 = vsyncpa [#allocation15], 1
    %1017 = vsyncpa [#allocation18], 1
    %1018 = vsyncpa [#allocation21], 1
    %1019 = vsyncpa [#allocation24], 1
    %1020 = vsyncpa [#allocation27], 1
    %1021 = vsyncpa [#allocation30], 1
    %1022 = vsyncpa [#allocation4], 1

</llo_original>
